<compile_context>
chip_gen: v7x
topology: tpu7x:2x2x1
jax: 0.10.0
libtpu: 0.0.40
codegen_flags: <defaults>
</compile_context>

<pallas_src>
import functools

import jax
import jax.numpy as jnp
from jax.experimental import pallas as pl
from jax.experimental.pallas import tpu as pltpu


def _mlp_kernel(x_ref, w1_ref, b1_ref, w2_ref, b2_ref, w3_ref, b3_ref,
                w4_ref, b4_ref, o_ref):
    """Fused encoder/decoder MLP on a lane-dense (features, points) tile."""
    x = x_ref[...].astype(jnp.bfloat16)                       # (3, T)

    # Layer 1 (3 -> 64): MXU (K=3 costs the same number of pushes as K<=256;
    # putting it here frees the VPU, which is the saturating slot).
    h = jnp.dot(w1_ref[...], x, preferred_element_type=jnp.float32)
    h = jnp.maximum(h.astype(jnp.bfloat16) + b1_ref[...].astype(jnp.bfloat16), 0)

    # Layer 2 (64 -> 128): MXU, bf16 inputs, f32 accumulation; bf16 epilogue.
    h = jnp.dot(w2_ref[...], h, preferred_element_type=jnp.float32)
    h = jnp.maximum(h.astype(jnp.bfloat16) + b2_ref[...].astype(jnp.bfloat16), 0)

    # Layer 3 (128 -> 64): MXU.
    h = jnp.dot(w3_ref[...], h, preferred_element_type=jnp.float32)
    h = jnp.maximum(h.astype(jnp.bfloat16) + b3_ref[...].astype(jnp.bfloat16), 0)

    # Layer 4 (64 -> 3): MXU; final bias add in f32 for output precision.
    y = jnp.dot(w4_ref[...], h, preferred_element_type=jnp.float32) + b4_ref[...]
    o_ref[...] = y.astype(o_ref.dtype)                        # (3, T)


def _full_spec(shape):
    # Whole-array block, same tile for every grid step (DMA'd once, not re-fetched).
    return pl.BlockSpec(shape, lambda i: (0,) * len(shape))


def _round_up(a, b):
    return ((a + b - 1) // b) * b


@functools.partial(jax.jit, static_argnames=("tile_m",))
def point_cloud_autoencoder(x, params, tile_m=8192):
    """x: (..., 3) float32. Returns same shape/dtype."""
    w1, b1, w2, b2, w3, b3, w4, b4 = params
    orig_shape = x.shape

    # Lane-dense layout: points on the last (lane) axis. No full-array pad/slice;
    # the partial tail block is masked by Pallas on writeback.
    xt = x.reshape(-1, 3).T                     # (3, M)
    m = xt.shape[1]

    # Tile choice (all sizes are multiples of 128 lanes):
    #  * default 8192 points keeps per-step pipeline overhead <5% while using
    #    only ~10-15 MiB of VMEM (fits every generation, incl. v7x's 64 MiB/TC).
    #  * cap at 16384 so a user-supplied tile can't blow v7x's VMEM.
    #  * once m > 2048, cap the tile at round_up(cdiv(m,2),128) so the grid has
    #    at least 2 steps and the "parallel" axis can split across v7x's two TCs.
    tile_m = max(128, (min(int(tile_m), 16384) // 128) * 128)
    if m > 2048:
        tile = min(tile_m, _round_up(pl.cdiv(m, 2), 128))
    else:
        tile = min(tile_m, _round_up(m, 128))
    grid = (pl.cdiv(m, tile),)

    flops = 2 * m * (3 * 64 + 64 * 128 + 128 * 64 + 64 * 3)
    bytes_accessed = (24 * m                                     # x in + y out (f32)
                      + 2 * (64 * 3 + 128 * 64 + 64 * 128 + 3 * 64)   # bf16 weights
                      + 4 * (64 + 128 + 64 + 3))                      # f32 biases

    out = pl.pallas_call(
        _mlp_kernel,
        out_shape=jax.ShapeDtypeStruct((3, m), x.dtype),
        grid_spec=pltpu.PrefetchScalarGridSpec(
            num_scalar_prefetch=0,
            grid=grid,
            in_specs=[
                pl.BlockSpec((3, tile), lambda i: (0, i)),   # x tile (lane-dense)
                _full_spec(w1.shape), _full_spec(b1.shape),
                _full_spec(w2.shape), _full_spec(b2.shape),
                _full_spec(w3.shape), _full_spec(b3.shape),
                _full_spec(w4.shape), _full_spec(b4.shape),
            ],
            out_specs=pl.BlockSpec((3, tile), lambda i: (0, i)),
        ),
        compiler_params=pltpu.CompilerParams(
            dimension_semantics=("parallel",),
            vmem_limit_bytes=48 * 1024 * 1024),
        cost_estimate=pl.CostEstimate(
            flops=flops, transcendentals=0, bytes_accessed=bytes_accessed),
    )(xt, w1, b1, w2, b2, w3, b3, w4, b4)

    return out.T.reshape(orig_shape)


def init_params(key):
    """Deterministic init matching the PyTorch module's layer shapes.
       Weights in (out_features, in_features) layout, stored bf16 (MXU inputs);
       biases (out_features, 1) f32."""
    dims = [(3, 64), (64, 128), (128, 64), (64, 3)]
    params = []
    for din, dout in dims:
        key, kw, kb = jax.random.split(key, 3)
        bound = 1.0 / jnp.sqrt(din)
        w = jax.random.uniform(kw, (dout, din), jnp.float32, -bound, bound)
        b = jax.random.uniform(kb, (dout, 1), jnp.float32, -bound, bound)
        params += [w.astype(jnp.bfloat16), b]
    return tuple(params)


def _reference(x, params):
    w1, b1, w2, b2, w3, b3, w4, b4 = params

    def lin(h, w, b):
        return h @ w.astype(jnp.float32).T + b[:, 0]

    h = jnp.maximum(lin(x, w1, b1), 0.0)
    h = jnp.maximum(lin(h, w2, b2), 0.0)
    h = jnp.maximum(lin(h, w3, b3), 0.0)
    return lin(h, w4, b4)


def _check(x, params, **kw):
    y = jax.block_until_ready(point_cloud_autoencoder(x, params, **kw))
    y_ref = _reference(x, params)
    assert y.shape == x.shape
    # bf16 MXU inputs / bf16 epilogues (f32 accumulation) -> loosened tolerance.
    assert jnp.allclose(y, y_ref, atol=1e-1, rtol=1e-1), "mismatch vs reference"
    return y


if __name__ == "__main__":
    key = jax.random.PRNGKey(0)
    kparams, kx = jax.random.split(key)
    params = init_params(kparams)

    # Small point cloud batch: (batch=2, num_points=8, xyz=3) -> single tile.
    x_small = jax.random.normal(kx, (2, 8, 3), dtype=jnp.float32)
    _check(x_small, params)

    # Multi-tile grid with a non-multiple-of-128 masked tail (m=1000, tile=256 -> 4 steps).
    x_multi = jax.random.normal(jax.random.PRNGKey(1), (1000, 3), dtype=jnp.float32)
    _check(x_multi, params, tile_m=256)

    # m > 2048 path: grid forced to >=2 steps (v7x megacore split), partial last block.
    x_big = jax.random.normal(jax.random.PRNGKey(2), (2, 1600, 3), dtype=jnp.float32)
    _check(x_big, params)

    print("KERNEL_OK")
</pallas_src>

<mosaic_0001>
module attributes {stable_mosaic.version = 11 : i64} {
  func.func @_mlp_kernel(%arg0: i32, %arg1: memref<3x128xf32, #tpu.memory_space<vmem>>, %arg2: memref<64x3xbf16, #tpu.memory_space<vmem>>, %arg3: memref<64x1xf32, #tpu.memory_space<vmem>>, %arg4: memref<128x64xbf16, #tpu.memory_space<vmem>>, %arg5: memref<128x1xf32, #tpu.memory_space<vmem>>, %arg6: memref<64x128xbf16, #tpu.memory_space<vmem>>, %arg7: memref<64x1xf32, #tpu.memory_space<vmem>>, %arg8: memref<3x64xbf16, #tpu.memory_space<vmem>>, %arg9: memref<3x1xf32, #tpu.memory_space<vmem>>, %arg10: memref<3x128xf32, #tpu.memory_space<vmem>>) attributes {dimension_semantics = [#tpu.dimension_semantics<parallel>], iteration_bounds = array<i64: 1>, scalar_prefetch = 0 : i64, scratch_operands = 0 : i64, tpu.core_type = #tpu.core_type<tc>, window_params = [{transform_indices = @transform_0, window_bounds = array<i64: 3, 128>}, {pipeline_mode = #tpu.pipeline_mode<synchronous>, transform_indices = @transform_1, window_bounds = array<i64: 64, 3>}, {pipeline_mode = #tpu.pipeline_mode<synchronous>, transform_indices = @transform_2, window_bounds = array<i64: 64, 1>}, {pipeline_mode = #tpu.pipeline_mode<synchronous>, transform_indices = @transform_3, window_bounds = array<i64: 128, 64>}, {pipeline_mode = #tpu.pipeline_mode<synchronous>, transform_indices = @transform_4, window_bounds = array<i64: 128, 1>}, {pipeline_mode = #tpu.pipeline_mode<synchronous>, transform_indices = @transform_5, window_bounds = array<i64: 64, 128>}, {pipeline_mode = #tpu.pipeline_mode<synchronous>, transform_indices = @transform_6, window_bounds = array<i64: 64, 1>}, {pipeline_mode = #tpu.pipeline_mode<synchronous>, transform_indices = @transform_7, window_bounds = array<i64: 3, 64>}, {pipeline_mode = #tpu.pipeline_mode<synchronous>, transform_indices = @transform_8, window_bounds = array<i64: 3, 1>}, {transform_indices = @transform_9, window_bounds = array<i64: 3, 128>}]} {
    %c0 = arith.constant 0 : index
    %c0_0 = arith.constant 0 : index
    %0 = vector.load %arg1[%c0, %c0_0] : memref<3x128xf32, #tpu.memory_space<vmem>>, vector<3x128xf32>
    %1 = arith.truncf %0 : vector<3x128xf32> to vector<3x128xbf16>
    %c0_1 = arith.constant 0 : index
    %c0_2 = arith.constant 0 : index
    %2 = vector.load %arg2[%c0_1, %c0_2] : memref<64x3xbf16, #tpu.memory_space<vmem>>, vector<64x3xbf16>
    %cst = arith.constant dense<0.000000e+00> : vector<64x128xf32>
    %3 = tpu.matmul %2, %1, %cst {dimension_numbers = #tpu.dot_dimension_numbers<[1], [0], [0], [1], [0, 0, 1, 1], [], []>} : vector<64x3xbf16>, vector<3x128xbf16>, vector<64x128xf32> -> vector<64x128xf32>
    %4 = arith.truncf %3 : vector<64x128xf32> to vector<64x128xbf16>
    %c0_3 = arith.constant 0 : index
    %c0_4 = arith.constant 0 : index
    %5 = vector.load %arg3[%c0_3, %c0_4] : memref<64x1xf32, #tpu.memory_space<vmem>>, vector<64x1xf32>
    %6 = arith.truncf %5 : vector<64x1xf32> to vector<64x1xbf16>
    %7 = vector.broadcast %6 : vector<64x1xbf16> to vector<64x128xbf16>
    %8 = arith.addf %4, %7 : vector<64x128xbf16>
    %cst_5 = arith.constant 0.000000e+00 : bf16
    %9 = vector.broadcast %cst_5 : bf16 to vector<64x128xbf16>
    %10 = arith.maximumf %8, %9 : vector<64x128xbf16>
    %c0_6 = arith.constant 0 : index
    %c0_7 = arith.constant 0 : index
    %11 = vector.load %arg4[%c0_6, %c0_7] : memref<128x64xbf16, #tpu.memory_space<vmem>>, vector<128x64xbf16>
    %cst_8 = arith.constant dense<0.000000e+00> : vector<128x128xf32>
    %12 = tpu.matmul %11, %10, %cst_8 {dimension_numbers = #tpu.dot_dimension_numbers<[1], [0], [0], [1], [0, 0, 1, 1], [], []>} : vector<128x64xbf16>, vector<64x128xbf16>, vector<128x128xf32> -> vector<128x128xf32>
    %13 = arith.truncf %12 : vector<128x128xf32> to vector<128x128xbf16>
    %c0_9 = arith.constant 0 : index
    %c0_10 = arith.constant 0 : index
    %14 = vector.load %arg5[%c0_9, %c0_10] : memref<128x1xf32, #tpu.memory_space<vmem>>, vector<128x1xf32>
    %15 = arith.truncf %14 : vector<128x1xf32> to vector<128x1xbf16>
    %16 = vector.broadcast %15 : vector<128x1xbf16> to vector<128x128xbf16>
    %17 = arith.addf %13, %16 : vector<128x128xbf16>
    %cst_11 = arith.constant 0.000000e+00 : bf16
    %18 = vector.broadcast %cst_11 : bf16 to vector<128x128xbf16>
    %19 = arith.maximumf %17, %18 : vector<128x128xbf16>
    %c0_12 = arith.constant 0 : index
    %c0_13 = arith.constant 0 : index
    %20 = vector.load %arg6[%c0_12, %c0_13] : memref<64x128xbf16, #tpu.memory_space<vmem>>, vector<64x128xbf16>
    %cst_14 = arith.constant dense<0.000000e+00> : vector<64x128xf32>
    %21 = tpu.matmul %20, %19, %cst_14 {dimension_numbers = #tpu.dot_dimension_numbers<[1], [0], [0], [1], [0, 0, 1, 1], [], []>} : vector<64x128xbf16>, vector<128x128xbf16>, vector<64x128xf32> -> vector<64x128xf32>
    %22 = arith.truncf %21 : vector<64x128xf32> to vector<64x128xbf16>
    %c0_15 = arith.constant 0 : index
    %c0_16 = arith.constant 0 : index
    %23 = vector.load %arg7[%c0_15, %c0_16] : memref<64x1xf32, #tpu.memory_space<vmem>>, vector<64x1xf32>
    %24 = arith.truncf %23 : vector<64x1xf32> to vector<64x1xbf16>
    %25 = vector.broadcast %24 : vector<64x1xbf16> to vector<64x128xbf16>
    %26 = arith.addf %22, %25 : vector<64x128xbf16>
    %cst_17 = arith.constant 0.000000e+00 : bf16
    %27 = vector.broadcast %cst_17 : bf16 to vector<64x128xbf16>
    %28 = arith.maximumf %26, %27 : vector<64x128xbf16>
    %c0_18 = arith.constant 0 : index
    %c0_19 = arith.constant 0 : index
    %29 = vector.load %arg8[%c0_18, %c0_19] : memref<3x64xbf16, #tpu.memory_space<vmem>>, vector<3x64xbf16>
    %cst_20 = arith.constant dense<0.000000e+00> : vector<3x128xf32>
    %30 = tpu.matmul %29, %28, %cst_20 {dimension_numbers = #tpu.dot_dimension_numbers<[1], [0], [0], [1], [0, 0, 1, 1], [], []>} : vector<3x64xbf16>, vector<64x128xbf16>, vector<3x128xf32> -> vector<3x128xf32>
    %c0_21 = arith.constant 0 : index
    %c0_22 = arith.constant 0 : index
    %31 = vector.load %arg9[%c0_21, %c0_22] : memref<3x1xf32, #tpu.memory_space<vmem>>, vector<3x1xf32>
    %32 = vector.broadcast %31 : vector<3x1xf32> to vector<3x128xf32>
    %33 = arith.addf %30, %32 : vector<3x128xf32>
    %c0_23 = arith.constant 0 : index
    %c0_24 = arith.constant 0 : index
    %34 = vector.load %arg10[%c0_23, %c0_24] : memref<3x128xf32, #tpu.memory_space<vmem>>, vector<3x128xf32>
    tpu.vector_store %arg10[%c0_23, %c0_24], %33 {strides = array<i32>} : memref<3x128xf32, #tpu.memory_space<vmem>>, vector<3x128xf32>,
    return
  }
  func.func @transform_0(%arg0: i32) -> (i32, i32) {
    %c0_i32 = arith.constant 0 : i32
    %c0_i32_0 = arith.constant 0 : i32
    return %c0_i32, %arg0 : i32, i32
  }
  func.func @transform_1(%arg0: i32) -> (i32, i32) {
    %c0_i32 = arith.constant 0 : i32
    %c0_i32_0 = arith.constant 0 : i32
    %c0_i32_1 = arith.constant 0 : i32
    return %c0_i32, %c0_i32_0 : i32, i32
  }
  func.func @transform_2(%arg0: i32) -> (i32, i32) {
    %c0_i32 = arith.constant 0 : i32
    %c0_i32_0 = arith.constant 0 : i32
    %c0_i32_1 = arith.constant 0 : i32
    return %c0_i32, %c0_i32_0 : i32, i32
  }
  func.func @transform_3(%arg0: i32) -> (i32, i32) {
    %c0_i32 = arith.constant 0 : i32
    %c0_i32_0 = arith.constant 0 : i32
    %c0_i32_1 = arith.constant 0 : i32
    return %c0_i32, %c0_i32_0 : i32, i32
  }
  func.func @transform_4(%arg0: i32) -> (i32, i32) {
    %c0_i32 = arith.constant 0 : i32
    %c0_i32_0 = arith.constant 0 : i32
    %c0_i32_1 = arith.constant 0 : i32
    return %c0_i32, %c0_i32_0 : i32, i32
  }
  func.func @transform_5(%arg0: i32) -> (i32, i32) {
    %c0_i32 = arith.constant 0 : i32
    %c0_i32_0 = arith.constant 0 : i32
    %c0_i32_1 = arith.constant 0 : i32
    return %c0_i32, %c0_i32_0 : i32, i32
  }
  func.func @transform_6(%arg0: i32) -> (i32, i32) {
    %c0_i32 = arith.constant 0 : i32
    %c0_i32_0 = arith.constant 0 : i32
    %c0_i32_1 = arith.constant 0 : i32
    return %c0_i32, %c0_i32_0 : i32, i32
  }
  func.func @transform_7(%arg0: i32) -> (i32, i32) {
    %c0_i32 = arith.constant 0 : i32
    %c0_i32_0 = arith.constant 0 : i32
    %c0_i32_1 = arith.constant 0 : i32
    return %c0_i32, %c0_i32_0 : i32, i32
  }
  func.func @transform_8(%arg0: i32) -> (i32, i32) {
    %c0_i32 = arith.constant 0 : i32
    %c0_i32_0 = arith.constant 0 : i32
    %c0_i32_1 = arith.constant 0 : i32
    return %c0_i32, %c0_i32_0 : i32, i32
  }
  func.func @transform_9(%arg0: i32) -> (i32, i32) {
    %c0_i32 = arith.constant 0 : i32
    %c0_i32_0 = arith.constant 0 : i32
    return %c0_i32, %arg0 : i32, i32
  }
}

</mosaic_0001>

<llo_original>
// kernel: point_cloud_autoencoder.1
$region0: #{point_cloud_autoencoder.1}
  #allocation0 [shape = 'u32[]', space=smem, size = 0x4, offset = 0x4, fixed_abs, tag = 'smem constant byte address 0x4 - core index']
  #allocation1 [shape = 'u32[144,128]{1,0:T(1,128)}', space=vmem, size = 0x12000, scoped, tag = 'internal scratch']
  %s0 = inlined_call_operand.vmem [shape: f32[3,16], index: 0, kind: input, shape index: {}]
  %s1 = inlined_call_operand.vmem [shape: bf16[64,3], index: 1, kind: input, shape index: {}]
  %s2 = inlined_call_operand.vmem [shape: f32[64,1], index: 2, kind: input, shape index: {}]
  %s3 = inlined_call_operand.vmem [shape: bf16[128,64], index: 3, kind: input, shape index: {}]
  %s4 = inlined_call_operand.vmem [shape: f32[128,1], index: 4, kind: input, shape index: {}]
  %s5 = inlined_call_operand.vmem [shape: bf16[64,128], index: 5, kind: input, shape index: {}]
  %s6 = inlined_call_operand.vmem [shape: f32[64,1], index: 6, kind: input, shape index: {}]
  %s7 = inlined_call_operand.vmem [shape: bf16[3,64], index: 7, kind: input, shape index: {}]
  %s8 = inlined_call_operand.vmem [shape: f32[3,1], index: 8, kind: input, shape index: {}]
  %s9 = inlined_call_operand.vmem [shape: f32[3,16], index: 9, kind: output, shape index: {}]
  %s10 = sld [smem:[#allocation0]]
  $region46: #{point_cloud_autoencoder.1} parent=0
    _
  %s12 = ssub.s32 1, %s10
  %s13 = scalar_select 0, %s12, %s10
  // Predicated region
  $region2: #{point_cloud_autoencoder.1} parent=0 // pred_check
    _
  $region3: #{point_cloud_autoencoder.1} parent=0 // pred_check_branch
    %15 = sbr.rel (0) target = $region5
  $region4: #{point_cloud_autoencoder.1} parent=0 // pred_region
    _
  $region5: #{point_cloud_autoencoder.1} parent=0 // pred_fallthru
    _
  // Predicated region
  $region6: #{point_cloud_autoencoder.1} parent=0 // pred_check
    _
  $region7: #{point_cloud_autoencoder.1} parent=0 // pred_check_branch
    %17 = sbr.rel (0) target = $region9
  $region8: #{point_cloud_autoencoder.1} parent=0 // pred_region
    _
  $region9: #{point_cloud_autoencoder.1} parent=0 // pred_fallthru
    _
  // Predicated region
  $region10: #{point_cloud_autoencoder.1} parent=0 // pred_check
    _
  $region11: #{point_cloud_autoencoder.1} parent=0 // pred_check_branch
    %19 = sbr.rel (0) target = $region13
  $region12: #{point_cloud_autoencoder.1} parent=0 // pred_region
    _
  $region13: #{point_cloud_autoencoder.1} parent=0 // pred_fallthru
    _
  // Predicated region
  $region14: #{point_cloud_autoencoder.1} parent=0 // pred_check
    _
  $region15: #{point_cloud_autoencoder.1} parent=0 // pred_check_branch
    %21 = sbr.rel (0) target = $region17
  $region16: #{point_cloud_autoencoder.1} parent=0 // pred_region
    _
  $region17: #{point_cloud_autoencoder.1} parent=0 // pred_fallthru
    _
  // Predicated region
  $region18: #{point_cloud_autoencoder.1} parent=0 // pred_check
    _
  $region19: #{point_cloud_autoencoder.1} parent=0 // pred_check_branch
    %23 = sbr.rel (0) target = $region21
  $region20: #{point_cloud_autoencoder.1} parent=0 // pred_region
    _
  $region21: #{point_cloud_autoencoder.1} parent=0 // pred_fallthru
    _
  // Predicated region
  $region22: #{point_cloud_autoencoder.1} parent=0 // pred_check
    _
  $region23: #{point_cloud_autoencoder.1} parent=0 // pred_check_branch
    %25 = sbr.rel (0) target = $region25
  $region24: #{point_cloud_autoencoder.1} parent=0 // pred_region
    _
  $region25: #{point_cloud_autoencoder.1} parent=0 // pred_fallthru
    _
  // Predicated region
  $region26: #{point_cloud_autoencoder.1} parent=0 // pred_check
    _
  $region27: #{point_cloud_autoencoder.1} parent=0 // pred_check_branch
    %27 = sbr.rel (0) target = $region29
  $region28: #{point_cloud_autoencoder.1} parent=0 // pred_region
    _
  $region29: #{point_cloud_autoencoder.1} parent=0 // pred_fallthru
    _
  // Predicated region
  $region30: #{point_cloud_autoencoder.1} parent=0 // pred_check
    _
  $region31: #{point_cloud_autoencoder.1} parent=0 // pred_check_branch
    %29 = sbr.rel (0) target = $region33
  $region32: #{point_cloud_autoencoder.1} parent=0 // pred_region
    _
  $region33: #{point_cloud_autoencoder.1} parent=0 // pred_fallthru
    _
  // Predicated region
  $region34: #{point_cloud_autoencoder.1} parent=0 // pred_check
    _
  $region35: #{point_cloud_autoencoder.1} parent=0 // pred_check_branch
    %31 = sbr.rel (0) target = $region37
  $region36: #{point_cloud_autoencoder.1} parent=0 // pred_region
    _
  $region37: #{point_cloud_autoencoder.1} parent=0 // pred_fallthru
    _
  %v33 = vld [vmem:[%s0] sm:$0x7]
  %v34 = vpack.c.bf16 %v33, %v33
  %v35 = vld [vmem:[%s1] sm:$0xf]
  %v36 = vld [vmem:[%s1 + $0x4] sm:$0xf]
  %v37 = vld [vmem:[%s1 + $0x8] sm:$0xf]
  %v38 = vld [vmem:[%s1 + $0xc] sm:$0xf]
  %v39 = vld [vmem:[%s1 + $0x10] sm:$0xf]
  %v40 = vld [vmem:[%s1 + $0x14] sm:$0xf]
  %v41 = vld [vmem:[%s1 + $0x18] sm:$0xf]
  %v42 = vld [vmem:[%s1 + $0x1c] sm:$0xf]
  %v51 = vunpack.c.l.b16 %v35
  %v52 = vunpack.c.l.b16 %v36
  %v53 = vunpack.c.l.b16 %v37
  %v54 = vunpack.c.l.b16 %v38
  %v55 = vunpack.c.l.b16 %v39
  %v56 = vunpack.c.l.b16 %v40
  %v57 = vunpack.c.l.b16 %v41
  %v58 = vunpack.c.l.b16 %v42
  %v59 = vpack.c.b16 %v52, %v51
  %v60 = vpack.c.b16 %v54, %v53
  %v61 = vpack.c.b16 %v56, %v55
  %v62 = vpack.c.b16 %v58, %v57
  %vm63 = vcmask 23552
  %v65 = vsel %vm63, %v59, 0
  %v68 = vsel %vm63, %v60, 0
  %v71 = vsel %vm63, %v61, 0
  %v74 = vsel %vm63, %v62, 0
  %vm76 = vcmask 1040384
  %vm77 = vcmask 1041408
  %v78 = vsel %vm76, 4294967295, 65535
  %v79 = vsel %vm77, %v78, 0
  %v81 = vand.u32 %v34, %v79
  %83 = vmatprep.subr.bf16.mxu0 0
  %84 = vmatpush1.bf16.msra.mxu0 %v81
  %85 = vmatprep.subr.bf16.mxu0 0
  %86 = vmatpush1.bf16.msra.mxu0 0
  %87 = vmatprep.subr.bf16.mxu0 0
  %88 = vmatpush1.bf16.msra.mxu0 0
  %89 = vmatprep.subr.bf16.mxu0 0
  %90 = vmatpush1.bf16.msra.mxu0 0
  %91 = vmatprep.subr.bf16.mxu0 0
  %92 = vmatpush1.bf16.msra.mxu0 0
  %93 = vmatprep.subr.bf16.mxu0 0
  %94 = vmatpush1.bf16.msra.mxu0 0
  %95 = vmatprep.subr.bf16.mxu0 0
  %96 = vmatpush1.bf16.msra.mxu0 0
  %97 = vmatprep.subr.bf16.mxu0 0
  %98 = vmatpush1.bf16.msra.mxu0 0
  %99 = vmatprep.subr.bf16.mxu0 0
  %100 = vmatpush1.bf16.msra.mxu0 0
  %101 = vmatprep.subr.bf16.mxu0 0
  %102 = vmatpush1.bf16.msra.mxu0 0
  %103 = vmatprep.subr.bf16.mxu0 0
  %104 = vmatpush1.bf16.msra.mxu0 0
  %105 = vmatprep.subr.bf16.mxu0 0
  %106 = vmatpush1.bf16.msra.mxu0 0
  %107 = vmatprep.subr.bf16.mxu0 0
  %108 = vmatpush1.bf16.msra.mxu0 0
  %109 = vmatprep.subr.bf16.mxu0 0
  %110 = vmatpush1.bf16.msra.mxu0 0
  %111 = vmatprep.subr.bf16.mxu0 0
  %112 = vmatpush1.bf16.msra.mxu0 0
  %113 = vmatprep.subr.bf16.mxu0 0
  %114 = vmatpush1.bf16.msra.mxu0 0
  %115 = vmatprep.mubr.bf16.mxu0 0
  %116 = vmatmul.mubr.bf16.gmra.mrb[0].mxu0 %v65
  %v117 = vpop.f32.mrb[0].mxu0
  %v118 = vadd.f32 0.0, %v117
  %v119 = vpop.f32.mrb[0].mxu0
  %v120 = vpop.f32.mrb[0].mxu0
  %v121 = vadd.f32 0.0, %v120
  %v122 = vpop.f32.mrb[0].mxu0
  %123 = vmatprep.mubr.bf16.mxu0 0
  %124 = vmatmul.mubr.bf16.gmra.mrb[0].mxu0 %v68
  %v125 = vpop.f32.mrb[0].mxu0
  %v126 = vadd.f32 0.0, %v125
  %v127 = vpop.f32.mrb[0].mxu0
  %v128 = vpop.f32.mrb[0].mxu0
  %v129 = vadd.f32 0.0, %v128
  %v130 = vpop.f32.mrb[0].mxu0
  %131 = vmatprep.mubr.bf16.mxu0 0
  %132 = vmatmul.mubr.bf16.gmra.mrb[0].mxu0 %v71
  %v133 = vpop.f32.mrb[0].mxu0
  %v134 = vadd.f32 0.0, %v133
  %v135 = vpop.f32.mrb[0].mxu0
  %v136 = vpop.f32.mrb[0].mxu0
  %v137 = vadd.f32 0.0, %v136
  %v138 = vpop.f32.mrb[0].mxu0
  %139 = vmatprep.mubr.bf16.mxu0 0
  %140 = vmatmul.mubr.bf16.gmra.mrb[0].mxu0 %v74
  %v141 = vpop.f32.mrb[0].mxu0
  %v142 = vadd.f32 0.0, %v141
  %v143 = vpop.f32.mrb[0].mxu0
  %v144 = vpop.f32.mrb[0].mxu0
  %v145 = vadd.f32 0.0, %v144
  %v146 = vpop.f32.mrb[0].mxu0
  %147 = vdwg.mxu0
  %v148 = vpack.c.bf16 %v121, %v118
  %v149 = vpack.c.bf16 %v129, %v126
  %v150 = vpack.c.bf16 %v137, %v134
  %v151 = vpack.c.bf16 %v145, %v142
  %v152 = vld [vmem:[%s2] sm:$0xff]
  %v153 = vld [vmem:[%s2 + $0x8] sm:$0xff]
  %v154 = vld [vmem:[%s2 + $0x10] sm:$0xff]
  %v155 = vld [vmem:[%s2 + $0x18] sm:$0xff]
  %v156 = vld [vmem:[%s2 + $0x20] sm:$0xff]
  %v157 = vld [vmem:[%s2 + $0x28] sm:$0xff]
  %v158 = vld [vmem:[%s2 + $0x30] sm:$0xff]
  %v159 = vld [vmem:[%s2 + $0x38] sm:$0xff]
  %v160 = vpack.c.bf16 %v153, %v152
  %v161 = vpack.c.bf16 %v155, %v154
  %v162 = vpack.c.bf16 %v157, %v156
  %v163 = vpack.c.bf16 %v159, %v158
  %165 = vset.pattern.permute.xlu0 0
  %166 = vperm.xlu0 %165, %v160
  %v167 = vpop.permute.xlu0 %166
  %170 = vset.pattern.permute.xlu0 0
  %171 = vperm.xlu0 %170, %v161
  %v172 = vpop.permute.xlu0 %171
  %175 = vset.pattern.permute.xlu0 0
  %176 = vperm.xlu0 %175, %v162
  %v177 = vpop.permute.xlu0 %176
  %180 = vset.pattern.permute.xlu0 0
  %181 = vperm.xlu0 %180, %v163
  %v182 = vpop.permute.xlu0 %181
  %v184 = vadd.bf16 %v148, %v167
  %v185 = vadd.bf16 %v149, %v172
  %v186 = vadd.bf16 %v150, %v177
  %v187 = vadd.bf16 %v151, %v182
  %v188 = vmax.bf16 %v184, 0
  %v189 = vmax.bf16 %v185, 0
  %v190 = vmax.bf16 %v186, 0
  %v191 = vmax.bf16 %v187, 0
  %v192 = vld [vmem:[%s3] sm:$0xf]
  %v193 = vld [vmem:[%s3 + $0x4] sm:$0xf]
  %v194 = vld [vmem:[%s3 + $0x8] sm:$0xf]
  %v195 = vld [vmem:[%s3 + $0xc] sm:$0xf]
  %v196 = vld [vmem:[%s3 + $0x10] sm:$0xf]
  %v197 = vld [vmem:[%s3 + $0x14] sm:$0xf]
  %v198 = vld [vmem:[%s3 + $0x18] sm:$0xf]
  %v199 = vld [vmem:[%s3 + $0x1c] sm:$0xf]
  %v200 = vld [vmem:[%s3 + $0x20] sm:$0xf]
  %v201 = vld [vmem:[%s3 + $0x24] sm:$0xf]
  %v202 = vld [vmem:[%s3 + $0x28] sm:$0xf]
  %v203 = vld [vmem:[%s3 + $0x2c] sm:$0xf]
  %v204 = vld [vmem:[%s3 + $0x30] sm:$0xf]
  %v205 = vld [vmem:[%s3 + $0x34] sm:$0xf]
  %v206 = vld [vmem:[%s3 + $0x38] sm:$0xf]
  %v207 = vld [vmem:[%s3 + $0x3c] sm:$0xf]
  %v224 = vunpack.c.l.b16 %v192
  %v225 = vunpack.c.l.b16 %v193
  %v226 = vunpack.c.l.b16 %v194
  %v227 = vunpack.c.l.b16 %v195
  %v228 = vunpack.c.l.b16 %v196
  %v229 = vunpack.c.l.b16 %v197
  %v230 = vunpack.c.l.b16 %v198
  %v231 = vunpack.c.l.b16 %v199
  %v232 = vunpack.c.l.b16 %v200
  %v233 = vunpack.c.l.b16 %v201
  %v234 = vunpack.c.l.b16 %v202
  %v235 = vunpack.c.l.b16 %v203
  %v236 = vunpack.c.l.b16 %v204
  %v237 = vunpack.c.l.b16 %v205
  %v238 = vunpack.c.l.b16 %v206
  %v239 = vunpack.c.l.b16 %v207
  %v240 = vpack.c.b16 %v225, %v224
  %v241 = vpack.c.b16 %v227, %v226
  %v242 = vpack.c.b16 %v229, %v228
  %v243 = vpack.c.b16 %v231, %v230
  %v244 = vpack.c.b16 %v233, %v232
  %v245 = vpack.c.b16 %v235, %v234
  %v246 = vpack.c.b16 %v237, %v236
  %v247 = vpack.c.b16 %v239, %v238
  %vm248 = vcmask 523264
  %v250 = vsel %vm248, %v240, 0
  %v253 = vsel %vm248, %v241, 0
  %v256 = vsel %vm248, %v242, 0
  %v259 = vsel %vm248, %v243, 0
  %v262 = vsel %vm248, %v244, 0
  %v265 = vsel %vm248, %v245, 0
  %v268 = vsel %vm248, %v246, 0
  %v271 = vsel %vm248, %v247, 0
  %273 = vmatprep.subr.bf16.mxu0 0
  %274 = vmatpush1.bf16.msra.mxu0 %v188
  %275 = vmatprep.subr.bf16.mxu0 0
  %276 = vmatpush1.bf16.msra.mxu0 %v189
  %277 = vmatprep.subr.bf16.mxu0 0
  %278 = vmatpush1.bf16.msra.mxu0 %v190
  %279 = vmatprep.subr.bf16.mxu0 0
  %280 = vmatpush1.bf16.msra.mxu0 %v191
  %281 = vmatprep.subr.bf16.mxu0 0
  %282 = vmatpush1.bf16.msra.mxu0 0
  %283 = vmatprep.subr.bf16.mxu0 0
  %284 = vmatpush1.bf16.msra.mxu0 0
  %285 = vmatprep.subr.bf16.mxu0 0
  %286 = vmatpush1.bf16.msra.mxu0 0
  %287 = vmatprep.subr.bf16.mxu0 0
  %288 = vmatpush1.bf16.msra.mxu0 0
  %289 = vmatprep.subr.bf16.mxu0 0
  %290 = vmatpush1.bf16.msra.mxu0 0
  %291 = vmatprep.subr.bf16.mxu0 0
  %292 = vmatpush1.bf16.msra.mxu0 0
  %293 = vmatprep.subr.bf16.mxu0 0
  %294 = vmatpush1.bf16.msra.mxu0 0
  %295 = vmatprep.subr.bf16.mxu0 0
  %296 = vmatpush1.bf16.msra.mxu0 0
  %297 = vmatprep.subr.bf16.mxu0 0
  %298 = vmatpush1.bf16.msra.mxu0 0
  %299 = vmatprep.subr.bf16.mxu0 0
  %300 = vmatpush1.bf16.msra.mxu0 0
  %301 = vmatprep.subr.bf16.mxu0 0
  %302 = vmatpush1.bf16.msra.mxu0 0
  %303 = vmatprep.subr.bf16.mxu0 0
  %304 = vmatpush1.bf16.msra.mxu0 0
  %305 = vmatprep.mubr.bf16.mxu0 0
  %306 = vmatmul.mubr.bf16.gmra.mrb[0].mxu0 %v250
  %v307 = vpop.f32.mrb[0].mxu0
  %v308 = vadd.f32 0.0, %v307
  %v309 = vpop.f32.mrb[0].mxu0
  %v310 = vpop.f32.mrb[0].mxu0
  %v311 = vadd.f32 0.0, %v310
  %v312 = vpop.f32.mrb[0].mxu0
  %313 = vmatprep.mubr.bf16.mxu0 0
  %314 = vmatmul.mubr.bf16.gmra.mrb[0].mxu0 %v253
  %v315 = vpop.f32.mrb[0].mxu0
  %v316 = vadd.f32 0.0, %v315
  %v317 = vpop.f32.mrb[0].mxu0
  %v318 = vpop.f32.mrb[0].mxu0
  %v319 = vadd.f32 0.0, %v318
  %v320 = vpop.f32.mrb[0].mxu0
  %321 = vmatprep.mubr.bf16.mxu0 0
  %322 = vmatmul.mubr.bf16.gmra.mrb[0].mxu0 %v256
  %v323 = vpop.f32.mrb[0].mxu0
  %v324 = vadd.f32 0.0, %v323
  %v325 = vpop.f32.mrb[0].mxu0
  %v326 = vpop.f32.mrb[0].mxu0
  %v327 = vadd.f32 0.0, %v326
  %v328 = vpop.f32.mrb[0].mxu0
  %329 = vmatprep.mubr.bf16.mxu0 0
  %330 = vmatmul.mubr.bf16.gmra.mrb[0].mxu0 %v259
  %v331 = vpop.f32.mrb[0].mxu0
  %v332 = vadd.f32 0.0, %v331
  %v333 = vpop.f32.mrb[0].mxu0
  %v334 = vpop.f32.mrb[0].mxu0
  %v335 = vadd.f32 0.0, %v334
  %v336 = vpop.f32.mrb[0].mxu0
  %337 = vmatprep.mubr.bf16.mxu0 0
  %338 = vmatmul.mubr.bf16.gmra.mrb[0].mxu0 %v262
  %v339 = vpop.f32.mrb[0].mxu0
  %v340 = vadd.f32 0.0, %v339
  %v341 = vpop.f32.mrb[0].mxu0
  %v342 = vpop.f32.mrb[0].mxu0
  %v343 = vadd.f32 0.0, %v342
  %v344 = vpop.f32.mrb[0].mxu0
  %345 = vmatprep.mubr.bf16.mxu0 0
  %346 = vmatmul.mubr.bf16.gmra.mrb[0].mxu0 %v265
  %v347 = vpop.f32.mrb[0].mxu0
  %v348 = vadd.f32 0.0, %v347
  %v349 = vpop.f32.mrb[0].mxu0
  %v350 = vpop.f32.mrb[0].mxu0
  %v351 = vadd.f32 0.0, %v350
  %v352 = vpop.f32.mrb[0].mxu0
  %353 = vmatprep.mubr.bf16.mxu0 0
  %354 = vmatmul.mubr.bf16.gmra.mrb[0].mxu0 %v268
  %v355 = vpop.f32.mrb[0].mxu0
  %v356 = vadd.f32 0.0, %v355
  %v357 = vpop.f32.mrb[0].mxu0
  %v358 = vpop.f32.mrb[0].mxu0
  %v359 = vadd.f32 0.0, %v358
  %v360 = vpop.f32.mrb[0].mxu0
  %361 = vmatprep.mubr.bf16.mxu0 0
  %362 = vmatmul.mubr.bf16.gmra.mrb[0].mxu0 %v271
  %v363 = vpop.f32.mrb[0].mxu0
  %v364 = vadd.f32 0.0, %v363
  %v365 = vpop.f32.mrb[0].mxu0
  %v366 = vpop.f32.mrb[0].mxu0
  %v367 = vadd.f32 0.0, %v366
  %v368 = vpop.f32.mrb[0].mxu0
  %369 = vdwg.mxu0
  %v370 = vpack.c.bf16 %v311, %v308
  %v371 = vpack.c.bf16 %v319, %v316
  %v372 = vpack.c.bf16 %v327, %v324
  %v373 = vpack.c.bf16 %v335, %v332
  %v374 = vpack.c.bf16 %v343, %v340
  %v375 = vpack.c.bf16 %v351, %v348
  %v376 = vpack.c.bf16 %v359, %v356
  %v377 = vpack.c.bf16 %v367, %v364
  %v378 = vld [vmem:[%s4] sm:$0xff]
  %v379 = vld [vmem:[%s4 + $0x8] sm:$0xff]
  %v380 = vld [vmem:[%s4 + $0x10] sm:$0xff]
  %v381 = vld [vmem:[%s4 + $0x18] sm:$0xff]
  %v382 = vld [vmem:[%s4 + $0x20] sm:$0xff]
  %v383 = vld [vmem:[%s4 + $0x28] sm:$0xff]
  %v384 = vld [vmem:[%s4 + $0x30] sm:$0xff]
  %v385 = vld [vmem:[%s4 + $0x38] sm:$0xff]
  %v386 = vld [vmem:[%s4 + $0x40] sm:$0xff]
  %v387 = vld [vmem:[%s4 + $0x48] sm:$0xff]
  %v388 = vld [vmem:[%s4 + $0x50] sm:$0xff]
  %v389 = vld [vmem:[%s4 + $0x58] sm:$0xff]
  %v390 = vld [vmem:[%s4 + $0x60] sm:$0xff]
  %v391 = vld [vmem:[%s4 + $0x68] sm:$0xff]
  %v392 = vld [vmem:[%s4 + $0x70] sm:$0xff]
  %v393 = vld [vmem:[%s4 + $0x78] sm:$0xff]
  %v394 = vpack.c.bf16 %v379, %v378
  %v395 = vpack.c.bf16 %v381, %v380
  %v396 = vpack.c.bf16 %v383, %v382
  %v397 = vpack.c.bf16 %v385, %v384
  %v398 = vpack.c.bf16 %v387, %v386
  %v399 = vpack.c.bf16 %v389, %v388
  %v400 = vpack.c.bf16 %v391, %v390
  %v401 = vpack.c.bf16 %v393, %v392
  %403 = vset.pattern.permute.xlu0 0
  %404 = vperm.xlu0 %403, %v394
  %v405 = vpop.permute.xlu0 %404
  %408 = vset.pattern.permute.xlu0 0
  %409 = vperm.xlu0 %408, %v395
  %v410 = vpop.permute.xlu0 %409
  %413 = vset.pattern.permute.xlu0 0
  %414 = vperm.xlu0 %413, %v396
  %v415 = vpop.permute.xlu0 %414
  %418 = vset.pattern.permute.xlu0 0
  %419 = vperm.xlu0 %418, %v397
  %v420 = vpop.permute.xlu0 %419
  %423 = vset.pattern.permute.xlu0 0
  %424 = vperm.xlu0 %423, %v398
  %v425 = vpop.permute.xlu0 %424
  %428 = vset.pattern.permute.xlu0 0
  %429 = vperm.xlu0 %428, %v399
  %v430 = vpop.permute.xlu0 %429
  %433 = vset.pattern.permute.xlu0 0
  %434 = vperm.xlu0 %433, %v400
  %v435 = vpop.permute.xlu0 %434
  %438 = vset.pattern.permute.xlu0 0
  %439 = vperm.xlu0 %438, %v401
  %v440 = vpop.permute.xlu0 %439
  %v442 = vadd.bf16 %v370, %v405
  %v443 = vadd.bf16 %v371, %v410
  %v444 = vadd.bf16 %v372, %v415
  %v445 = vadd.bf16 %v373, %v420
  %v446 = vadd.bf16 %v374, %v425
  %v447 = vadd.bf16 %v375, %v430
  %v448 = vadd.bf16 %v376, %v435
  %v449 = vadd.bf16 %v377, %v440
  %v450 = vmax.bf16 %v442, 0
  %v451 = vmax.bf16 %v443, 0
  %v452 = vmax.bf16 %v444, 0
  %v453 = vmax.bf16 %v445, 0
  %v454 = vmax.bf16 %v446, 0
  %v455 = vmax.bf16 %v447, 0
  %v456 = vmax.bf16 %v448, 0
  %v457 = vmax.bf16 %v449, 0
  %v458 = vld [vmem:[%s5] sm:$0xf]
  %v459 = vld [vmem:[%s5 + $0x4] sm:$0xf]
  %v460 = vld [vmem:[%s5 + $0x8] sm:$0xf]
  %v461 = vld [vmem:[%s5 + $0xc] sm:$0xf]
  %v462 = vld [vmem:[%s5 + $0x10] sm:$0xf]
  %v463 = vld [vmem:[%s5 + $0x14] sm:$0xf]
  %v464 = vld [vmem:[%s5 + $0x18] sm:$0xf]
  %v465 = vld [vmem:[%s5 + $0x1c] sm:$0xf]
  %v474 = vunpack.c.l.b16 %v458
  %v475 = vunpack.c.l.b16 %v459
  %v476 = vunpack.c.l.b16 %v460
  %v477 = vunpack.c.l.b16 %v461
  %v478 = vunpack.c.l.b16 %v462
  %v479 = vunpack.c.l.b16 %v463
  %v480 = vunpack.c.l.b16 %v464
  %v481 = vunpack.c.l.b16 %v465
  %v482 = vpack.c.b16 %v475, %v474
  %v483 = vpack.c.b16 %v477, %v476
  %v484 = vpack.c.b16 %v479, %v478
  %v485 = vpack.c.b16 %v481, %v480
  %490 = vmatprep.subr.bf16.mxu0 0
  %491 = vmatpush1.bf16.msra.mxu0 %v450
  %492 = vmatprep.subr.bf16.mxu0 0
  %493 = vmatpush1.bf16.msra.mxu0 %v451
  %494 = vmatprep.subr.bf16.mxu0 0
  %495 = vmatpush1.bf16.msra.mxu0 %v452
  %496 = vmatprep.subr.bf16.mxu0 0
  %497 = vmatpush1.bf16.msra.mxu0 %v453
  %498 = vmatprep.subr.bf16.mxu0 0
  %499 = vmatpush1.bf16.msra.mxu0 %v454
  %500 = vmatprep.subr.bf16.mxu0 0
  %501 = vmatpush1.bf16.msra.mxu0 %v455
  %502 = vmatprep.subr.bf16.mxu0 0
  %503 = vmatpush1.bf16.msra.mxu0 %v456
  %504 = vmatprep.subr.bf16.mxu0 0
  %505 = vmatpush1.bf16.msra.mxu0 %v457
  %506 = vmatprep.subr.bf16.mxu0 0
  %507 = vmatpush1.bf16.msra.mxu0 0
  %508 = vmatprep.subr.bf16.mxu0 0
  %509 = vmatpush1.bf16.msra.mxu0 0
  %510 = vmatprep.subr.bf16.mxu0 0
  %511 = vmatpush1.bf16.msra.mxu0 0
  %512 = vmatprep.subr.bf16.mxu0 0
  %513 = vmatpush1.bf16.msra.mxu0 0
  %514 = vmatprep.subr.bf16.mxu0 0
  %515 = vmatpush1.bf16.msra.mxu0 0
  %516 = vmatprep.subr.bf16.mxu0 0
  %517 = vmatpush1.bf16.msra.mxu0 0
  %518 = vmatprep.subr.bf16.mxu0 0
  %519 = vmatpush1.bf16.msra.mxu0 0
  %520 = vmatprep.subr.bf16.mxu0 0
  %521 = vmatpush1.bf16.msra.mxu0 0
  %522 = vmatprep.mubr.bf16.mxu0 0
  %523 = vmatmul.mubr.bf16.gmra.mrb[0].mxu0 %v482
  %v524 = vpop.f32.mrb[0].mxu0
  %v525 = vadd.f32 0.0, %v524
  %v526 = vpop.f32.mrb[0].mxu0
  %v527 = vpop.f32.mrb[0].mxu0
  %v528 = vadd.f32 0.0, %v527
  %v529 = vpop.f32.mrb[0].mxu0
  %530 = vmatprep.mubr.bf16.mxu0 0
  %531 = vmatmul.mubr.bf16.gmra.mrb[0].mxu0 %v483
  %v532 = vpop.f32.mrb[0].mxu0
  %v533 = vadd.f32 0.0, %v532
  %v534 = vpop.f32.mrb[0].mxu0
  %v535 = vpop.f32.mrb[0].mxu0
  %v536 = vadd.f32 0.0, %v535
  %v537 = vpop.f32.mrb[0].mxu0
  %538 = vmatprep.mubr.bf16.mxu0 0
  %539 = vmatmul.mubr.bf16.gmra.mrb[0].mxu0 %v484
  %v540 = vpop.f32.mrb[0].mxu0
  %v541 = vadd.f32 0.0, %v540
  %v542 = vpop.f32.mrb[0].mxu0
  %v543 = vpop.f32.mrb[0].mxu0
  %v544 = vadd.f32 0.0, %v543
  %v545 = vpop.f32.mrb[0].mxu0
  %546 = vmatprep.mubr.bf16.mxu0 0
  %547 = vmatmul.mubr.bf16.gmra.mrb[0].mxu0 %v485
  %v548 = vpop.f32.mrb[0].mxu0
  %v549 = vadd.f32 0.0, %v548
  %v550 = vpop.f32.mrb[0].mxu0
  %v551 = vpop.f32.mrb[0].mxu0
  %v552 = vadd.f32 0.0, %v551
  %v553 = vpop.f32.mrb[0].mxu0
  %554 = vdwg.mxu0
  %v555 = vpack.c.bf16 %v528, %v525
  %v556 = vpack.c.bf16 %v536, %v533
  %v557 = vpack.c.bf16 %v544, %v541
  %v558 = vpack.c.bf16 %v552, %v549
  %v559 = vld [vmem:[%s6] sm:$0xff]
  %v560 = vld [vmem:[%s6 + $0x8] sm:$0xff]
  %v561 = vld [vmem:[%s6 + $0x10] sm:$0xff]
  %v562 = vld [vmem:[%s6 + $0x18] sm:$0xff]
  %v563 = vld [vmem:[%s6 + $0x20] sm:$0xff]
  %v564 = vld [vmem:[%s6 + $0x28] sm:$0xff]
  %v565 = vld [vmem:[%s6 + $0x30] sm:$0xff]
  %v566 = vld [vmem:[%s6 + $0x38] sm:$0xff]
  %v567 = vpack.c.bf16 %v560, %v559
  %v568 = vpack.c.bf16 %v562, %v561
  %v569 = vpack.c.bf16 %v564, %v563
  %v570 = vpack.c.bf16 %v566, %v565
  %572 = vset.pattern.permute.xlu0 0
  %573 = vperm.xlu0 %572, %v567
  %v574 = vpop.permute.xlu0 %573
  %577 = vset.pattern.permute.xlu0 0
  %578 = vperm.xlu0 %577, %v568
  %v579 = vpop.permute.xlu0 %578
  %582 = vset.pattern.permute.xlu0 0
  %583 = vperm.xlu0 %582, %v569
  %v584 = vpop.permute.xlu0 %583
  %587 = vset.pattern.permute.xlu0 0
  %588 = vperm.xlu0 %587, %v570
  %v589 = vpop.permute.xlu0 %588
  %v591 = vadd.bf16 %v555, %v574
  %v592 = vadd.bf16 %v556, %v579
  %v593 = vadd.bf16 %v557, %v584
  %v594 = vadd.bf16 %v558, %v589
  %v595 = vmax.bf16 %v591, 0
  %v596 = vmax.bf16 %v592, 0
  %v597 = vmax.bf16 %v593, 0
  %v598 = vmax.bf16 %v594, 0
  %v599 = vld [vmem:[%s7] sm:$0x3]
  %v600 = vld [vmem:[%s8] sm:$0x7]
  %602 = vset.pattern.permute.xlu0 0
  %603 = vperm.xlu0 %602, %v600
  %v604 = vpop.permute.xlu0 %603
  %v607 = vsel %vm248, %v599, 0
  %609 = vmatprep.subr.bf16.mxu0 0
  %610 = vmatpush1.bf16.msra.mxu0 %v595
  %611 = vmatprep.subr.bf16.mxu0 0
  %612 = vmatpush1.bf16.msra.mxu0 %v596
  %613 = vmatprep.subr.bf16.mxu0 0
  %614 = vmatpush1.bf16.msra.mxu0 %v597
  %615 = vmatprep.subr.bf16.mxu0 0
  %616 = vmatpush1.bf16.msra.mxu0 %v598
  %617 = vmatprep.subr.bf16.mxu0 0
  %618 = vmatpush1.bf16.msra.mxu0 0
  %619 = vmatprep.subr.bf16.mxu0 0
  %620 = vmatpush1.bf16.msra.mxu0 0
  %621 = vmatprep.subr.bf16.mxu0 0
  %622 = vmatpush1.bf16.msra.mxu0 0
  %623 = vmatprep.subr.bf16.mxu0 0
  %624 = vmatpush1.bf16.msra.mxu0 0
  %625 = vmatprep.subr.bf16.mxu0 0
  %626 = vmatpush1.bf16.msra.mxu0 0
  %627 = vmatprep.subr.bf16.mxu0 0
  %628 = vmatpush1.bf16.msra.mxu0 0
  %629 = vmatprep.subr.bf16.mxu0 0
  %630 = vmatpush1.bf16.msra.mxu0 0
  %631 = vmatprep.subr.bf16.mxu0 0
  %632 = vmatpush1.bf16.msra.mxu0 0
  %633 = vmatprep.subr.bf16.mxu0 0
  %634 = vmatpush1.bf16.msra.mxu0 0
  %635 = vmatprep.subr.bf16.mxu0 0
  %636 = vmatpush1.bf16.msra.mxu0 0
  %637 = vmatprep.subr.bf16.mxu0 0
  %638 = vmatpush1.bf16.msra.mxu0 0
  %639 = vmatprep.subr.bf16.mxu0 0
  %640 = vmatpush1.bf16.msra.mxu0 0
  %641 = vmatprep.mubr.bf16.mxu0 0
  %642 = vmatmul.mubr.bf16.gmra.mrb[0].mxu0 %v607
  %v643 = vpop.f32.mrb[0].mxu0
  %v644 = vadd.f32 %v604, %v643
  %v645 = vpop.f32.mrb[0].mxu0
  %v646 = vpop.f32.mrb[0].mxu0
  %v647 = vpop.f32.mrb[0].mxu0
  %648 = vdwg.mxu0
  %649 = vst [vmem:[%s9] sm:$0x7] %v644
  // Predicated region
  $region38: #{point_cloud_autoencoder.1} parent=0 // pred_check
    _
  $region39: #{point_cloud_autoencoder.1} parent=0 // pred_check_branch
    %651 = sbr.rel (0) target = $region41
  $region40: #{point_cloud_autoencoder.1} parent=0 // pred_region
    _
  $region41: #{point_cloud_autoencoder.1} parent=0 // pred_fallthru
    _
  // Predicated region
  $region42: #{point_cloud_autoencoder.1} parent=0 // pred_check
    _
  $region43: #{point_cloud_autoencoder.1} parent=0 // pred_check_branch
    %653 = sbr.rel (0) target = $region45
  $region44: #{point_cloud_autoencoder.1} parent=0 // pred_region
    _
  $region45: #{point_cloud_autoencoder.1} parent=0 // pred_fallthru
    _

</llo_original>
